<compile_context>
chip_gen: v7x
topology: tpu7x:2x2x1
jax: 0.10.0
libtpu: 0.0.40
codegen_flags: <defaults>
</compile_context>

<pallas_src>
import functools

import jax
import jax.numpy as jnp
from jax.experimental import pallas as pl
from jax.experimental.pallas import tpu as pltpu


def _rmsnorm_kernel(x_ref, w_ref, o_ref, *, eps: float, hidden: int):
    # x_ref: (block_rows, hidden), w_ref: (1, hidden)
    x = x_ref[...].astype(jnp.float32)
    # sum (XLU) * constant, then rsqrt (EUP): keeps the VALU free for the
    # x*x, x*inv and w*y multiplies.
    ms = jnp.sum(x * x, axis=-1, keepdims=True) * (1.0 / hidden)
    inv = jax.lax.rsqrt(ms + eps)
    w = w_ref[...].astype(jnp.float32)
    o_ref[...] = (x * inv * w).astype(o_ref.dtype)


def _tpu_hw_info():
    """(vmem_capacity_bytes, num_tensorcores, is_v7x) with safe fallbacks."""
    kind = ""
    try:
        kind = jax.devices()[0].device_kind.lower()
    except Exception:
        pass
    is_v7 = "v7" in kind
    vmem_capacity = None
    try:
        info = pltpu.get_tpu_info()
        vmem_capacity = int(getattr(info, "vmem_capacity_bytes"))
    except Exception:
        vmem_capacity = None
    if vmem_capacity is None or vmem_capacity <= 0:
        # Conservative defaults: v7x has 64 MiB/TC, v5e/v6e have 128 MiB.
        vmem_capacity = (64 if is_v7 else 128) * 1024 * 1024
    num_cores = 2 if is_v7 else 1
    return vmem_capacity, num_cores, is_v7


def _pick_block_rows(rows: int, hidden: int, itemsize: int,
                     target_block_bytes: int, num_cores: int) -> int:
    """Dtype-aware, VMEM-budgeted, core-balanced row-block size."""
    # Sublane packing: f32 -> 8 rows per vreg, bf16 -> 16, int8/fp8 -> 32.
    sublane = max(8, 32 // max(1, itemsize))
    if rows <= sublane:
        # Block equals the full row extent (legal even if < 8); single step.
        return rows
    row_bytes = max(1, hidden * itemsize)
    br = max(sublane, (target_block_bytes // row_bytes) // sublane * sublane)
    # Never exceed the row count: the (optional) partial block stays the last
    # one and all full blocks remain sublane-aligned.
    br = min(br, (rows // sublane) * sublane)
    if num_cores >= 2:
        # v7x: balance the 'parallel' row axis across both TensorCores —
        # round the step count up to a multiple of num_cores and re-split
        # rows evenly (sublane-aligned) so no core idles on a lone tail block.
        steps = pl.cdiv(rows, br)
        steps = ((steps + num_cores - 1) // num_cores) * num_cores
        even = pl.cdiv(pl.cdiv(rows, steps), sublane) * sublane
        br = max(sublane, min(br, even))
    return max(sublane, br)


def rmsnorm(x: jax.Array, weight: jax.Array, eps: float = 1e-6,
            block_rows: int | None = None) -> jax.Array:
    """RMSNorm over the last axis of x, scaled by `weight` (shape [hidden])."""
    orig_shape = x.shape
    hidden = orig_shape[-1]
    assert weight.shape == (hidden,)
    # NOTE: for full lane utilization `hidden` should be a multiple of 128
    # (true for real model dims); other values fall back to masked stores.

    x2d = x.reshape(-1, hidden)
    rows = x2d.shape[0]
    itemsize = jnp.dtype(x.dtype).itemsize
    w_itemsize = jnp.dtype(weight.dtype).itemsize

    vmem_capacity, num_cores, is_v7 = _tpu_hw_info()

    # Per input byte held in VMEM we need:
    #   2x input + 2x output (double-buffered, input dtype)            -> 4
    #   ~2 f32-wide in-kernel temporaries (x upcast, x*x intermediate) -> 8/itemsize
    cost_per_in_byte = 4 + (2 * 4) // max(1, itemsize)
    headroom = 2 * 1024 * 1024
    # Usable cap: leave physical headroom; never above ~96 MiB even on 128 MiB
    # parts (v5e/v6e), ~56 MiB on v7x's 64 MiB.
    vmem_cap = min(96 * 1024 * 1024, vmem_capacity - 8 * 1024 * 1024)

    # Generation target for the raw (input-dtype) block size, then clamp by
    # what actually fits in VMEM including the f32 temps.
    gen_target = (4 if is_v7 else 12) * 1024 * 1024
    max_block_bytes = max(hidden * itemsize,
                          (vmem_cap - headroom) // cost_per_in_byte)
    target_block_bytes = min(gen_target, max_block_bytes)

    if block_rows is None:
        block_rows = _pick_block_rows(rows, hidden, itemsize,
                                      target_block_bytes, num_cores)

    grid = (pl.cdiv(rows, block_rows),)          # no host-side padding
    w2d = weight.reshape(1, hidden)

    block_in_bytes = block_rows * hidden * itemsize

    # Optional deeper input pipelining on v7x for the small-block regime.
    x_spec_kwargs = {}
    extra_buffer_bytes = 0
    if is_v7 and block_in_bytes < (2 << 20) and hasattr(pl, "Buffered"):
        x_spec_kwargs["pipeline_mode"] = pl.Buffered(3)
        extra_buffer_bytes = block_in_bytes

    vmem_needed = (cost_per_in_byte * block_in_bytes
                   + extra_buffer_bytes
                   + 2 * hidden * w_itemsize
                   + headroom)
    vmem_limit_bytes = int(min(max(vmem_needed, min(32 * 1024 * 1024, vmem_cap)),
                               vmem_cap))
    vmem_limit_bytes = max(vmem_limit_bytes, int(min(vmem_needed, vmem_capacity)))

    cost = pl.CostEstimate(
        flops=4 * rows * hidden,
        transcendentals=rows,
        bytes_accessed=2 * rows * hidden * itemsize + hidden * w_itemsize,
    )

    out = pl.pallas_call(
        functools.partial(_rmsnorm_kernel, eps=eps, hidden=hidden),
        out_shape=jax.ShapeDtypeStruct((rows, hidden), x.dtype),
        grid_spec=pltpu.PrefetchScalarGridSpec(
            num_scalar_prefetch=0,
            grid=grid,
            in_specs=[
                pl.BlockSpec((block_rows, hidden), lambda i: (i, 0),
                             **x_spec_kwargs),
                pl.BlockSpec((1, hidden), lambda i: (0, 0)),
            ],
            out_specs=pl.BlockSpec((block_rows, hidden), lambda i: (i, 0)),
        ),
        compiler_params=pltpu.CompilerParams(
            dimension_semantics=("parallel",),
            vmem_limit_bytes=vmem_limit_bytes),
        cost_estimate=cost,
    )(x2d, w2d)

    return out.reshape(orig_shape)


if __name__ == "__main__":
    key = jax.random.PRNGKey(0)
    batch, seq, hidden = 2, 8, 128   # hidden multiple of 128 -> lane-dense stores
    eps = 1e-6

    # --- f32, ones-initialized weight (matches nn.Parameter(torch.ones(ndim)))
    x = jax.random.normal(key, (batch, seq, hidden), dtype=jnp.float32)
    weight = jnp.ones((hidden,), dtype=jnp.float32)
    y = rmsnorm(x, weight, eps)
    jax.block_until_ready(y)
    rms = jnp.sqrt(jnp.mean(x * x, axis=-1, keepdims=True) + eps)
    y_ref = weight * (x / rms)
    assert y.shape == x.shape and y.dtype == x.dtype
    assert jnp.allclose(y, y_ref, atol=1e-5, rtol=1e-5)

    # --- ragged row count exercises the pad-free partial-last-block path.
    x2 = jax.random.normal(jax.random.PRNGKey(1), (13, hidden), dtype=jnp.float32)
    w2 = 1.0 + 0.1 * jax.random.normal(jax.random.PRNGKey(2), (hidden,),
                                       dtype=jnp.float32)
    y2 = rmsnorm(x2, w2, eps)
    jax.block_until_ready(y2)
    rms2 = jnp.sqrt(jnp.mean(x2 * x2, axis=-1, keepdims=True) + eps)
    y2_ref = w2 * (x2 / rms2)
    assert jnp.allclose(y2, y2_ref, atol=1e-5, rtol=1e-5)

    # --- bf16 exercises the (now VMEM-budgeted) f32-upcast path.
    x3 = jax.random.normal(jax.random.PRNGKey(3), (batch, seq, hidden),
                           dtype=jnp.bfloat16)
    w3 = jnp.ones((hidden,), dtype=jnp.bfloat16)
    y3 = rmsnorm(x3, w3, eps)
    jax.block_until_ready(y3)
    x3f = x3.astype(jnp.float32)
    rms3 = jnp.sqrt(jnp.mean(x3f * x3f, axis=-1, keepdims=True) + eps)
    y3_ref = (x3f / rms3).astype(jnp.bfloat16)
    assert y3.dtype == jnp.bfloat16
    assert jnp.allclose(y3.astype(jnp.float32), y3_ref.astype(jnp.float32),
                        atol=2e-2, rtol=2e-2)

    print("KERNEL_OK")
</pallas_src>

<mosaic_0001>
module attributes {stable_mosaic.version = 11 : i64} {
  func.func @_rmsnorm_kernel(%arg0: i32, %arg1: memref<16x128xf32, #tpu.memory_space<vmem>>, %arg2: memref<1x128xf32, #tpu.memory_space<vmem>>, %arg3: memref<16x128xf32, #tpu.memory_space<vmem>>) attributes {dimension_semantics = [#tpu.dimension_semantics<parallel>], iteration_bounds = array<i64: 1>, scalar_prefetch = 0 : i64, scratch_operands = 0 : i64, tpu.core_type = #tpu.core_type<tc>, window_params = [{transform_indices = @transform_0, window_bounds = array<i64: 16, 128>}, {pipeline_mode = #tpu.pipeline_mode<synchronous>, transform_indices = @transform_1, window_bounds = array<i64: 1, 128>}, {transform_indices = @transform_2, window_bounds = array<i64: 16, 128>}]} {
    %c0 = arith.constant 0 : index
    %c0_0 = arith.constant 0 : index
    %0 = vector.load %arg1[%c0, %c0_0] : memref<16x128xf32, #tpu.memory_space<vmem>>, vector<16x128xf32>
    %1 = arith.mulf %0, %0 : vector<16x128xf32>
    %cst = arith.constant dense<0.000000e+00> : vector<16xf32>
    %2 = vector.multi_reduction <add>, %1, %cst [1] : vector<16x128xf32> to vector<16xf32>
    %3 = vector.shape_cast %2 : vector<16xf32> to vector<16x1xf32>
    %cst_1 = arith.constant 7.812500e-03 : f32
    %4 = vector.broadcast %cst_1 : f32 to vector<16x1xf32>
    %5 = arith.mulf %3, %4 : vector<16x1xf32>
    %cst_2 = arith.constant 9.99999997E-7 : f32
    %6 = vector.broadcast %cst_2 : f32 to vector<16x1xf32>
    %7 = arith.addf %5, %6 : vector<16x1xf32>
    %8 = math.rsqrt %7 : vector<16x1xf32>
    %c0_3 = arith.constant 0 : index
    %c0_4 = arith.constant 0 : index
    %9 = vector.load %arg2[%c0_3, %c0_4] : memref<1x128xf32, #tpu.memory_space<vmem>>, vector<1x128xf32>
    %10 = vector.broadcast %8 : vector<16x1xf32> to vector<16x128xf32>
    %11 = arith.mulf %0, %10 : vector<16x128xf32>
    %12 = vector.broadcast %9 : vector<1x128xf32> to vector<16x128xf32>
    %13 = arith.mulf %11, %12 : vector<16x128xf32>
    %c0_5 = arith.constant 0 : index
    %c0_6 = arith.constant 0 : index
    %14 = vector.load %arg3[%c0_5, %c0_6] : memref<16x128xf32, #tpu.memory_space<vmem>>, vector<16x128xf32>
    tpu.vector_store %arg3[%c0_5, %c0_6], %13 {strides = array<i32>} : memref<16x128xf32, #tpu.memory_space<vmem>>, vector<16x128xf32>,
    return
  }
  func.func @transform_0(%arg0: i32) -> (i32, i32) {
    %c0_i32 = arith.constant 0 : i32
    %c0_i32_0 = arith.constant 0 : i32
    return %arg0, %c0_i32 : i32, i32
  }
  func.func @transform_1(%arg0: i32) -> (i32, i32) {
    %c0_i32 = arith.constant 0 : i32
    %c0_i32_0 = arith.constant 0 : i32
    %c0_i32_1 = arith.constant 0 : i32
    return %c0_i32, %c0_i32_0 : i32, i32
  }
  func.func @transform_2(%arg0: i32) -> (i32, i32) {
    %c0_i32 = arith.constant 0 : i32
    %c0_i32_0 = arith.constant 0 : i32
    return %arg0, %c0_i32 : i32, i32
  }
}

</mosaic_0001>

<llo_original>
// kernel: tpu_custom_call.1
$region0: #{tpu_custom_call.1}
  #allocation0 [shape = 'u32[]', space=smem, size = 0x4, offset = 0x4, fixed_abs, tag = 'smem constant byte address 0x4 - core index']
  #allocation1 [shape = 'u32[144,128]{1,0:T(1,128)}', space=vmem, size = 0x12000, scoped, tag = 'internal scratch']
  %s0 = inlined_call_operand.hbm [shape: f32[16,128], index: 0, kind: input, shape index: {}]
  %s1 = inlined_call_operand.vmem [shape: f32[1,128], index: 1, kind: input, shape index: {}]
  %s2 = inlined_call_operand.hbm [shape: f32[16,128], index: 2, kind: output, shape index: {}]
  %s3 = sld [smem:[#allocation0]]
  $region22: #{tpu_custom_call.1} parent=0
    _
  %s5 = ssub.s32 1, %s3
  %s6 = scalar_select 0, %s5, %s3
  $region1: #{tpu_custom_call.1} parent=0
    #allocation2 [shape = 'u8[8192]{0}', space=vmem, size = 0x2000, scoped, tag = 'input window, operand 0, single buffered']
    #allocation3 [shape = 's32[1]{0}', space=sflag, size = 0x4, scoped, tag = 'scoped memory for tpu_custom_call.1']
    #allocation4 [shape = 's32[1]{0}', space=sflag, size = 0x4, scoped, tag = 'scoped memory for tpu_custom_call.1']
    #allocation5 [shape = 'u8[8192]{0}', space=vmem, size = 0x2000, scoped, tag = 'output window, operand 0, single buffered']
    %7 = vsyncpa [#allocation3], 0
    %8 = vsyncpa [#allocation4], 0
    // Predicated region
    $region2: #{tpu_custom_call.1} parent=1 // pred_check
      _
    $region3: #{tpu_custom_call.1} parent=1 // pred_check_branch
      %10 = sbr.rel (0) target = $region5
    $region4: #{tpu_custom_call.1} parent=1 // pred_region
      %s12 = ssub.s32 256, 256
      %13 = vsyncadd [#allocation3], %s12
      %s14 = sshll.u32 [#allocation2], 4
      %s15 = int_to_ptr.vmem [resolvable:$true] %s14
      %20 = dma.hbm_to_vmem [thread:$0]  %s0, 256, %s15, [#allocation3], 128, 128, 8
    $region5: #{tpu_custom_call.1} parent=1 // pred_fallthru
      _
    // Predicated region
    $region6: #{tpu_custom_call.1} parent=1 // pred_check
      _
    $region7: #{tpu_custom_call.1} parent=1 // pred_check_branch
      %22 = sbr.rel (0) target = $region9
    $region8: #{tpu_custom_call.1} parent=1 // pred_region
      _
    $region9: #{tpu_custom_call.1} parent=1 // pred_fallthru
      _
    // Predicated region
    $region10: #{tpu_custom_call.1} parent=1 // pred_check
      _
    $region11: #{tpu_custom_call.1} parent=1 // pred_check_branch
      %24 = sbr.rel (0) target = $region13
    $region12: #{tpu_custom_call.1} parent=1 // pred_region
      %25 = dma.done [#allocation3], 256
    $region13: #{tpu_custom_call.1} parent=1 // pred_fallthru
      _
    %v26 = vld [vmem:[#allocation2] sm:$0xff]
    %v27 = vld [vmem:[#allocation2 + $0x8] sm:$0xff]
    %v28 = vmul.f32 %v26, %v26
    %v29 = vmul.f32 %v27, %v27
    %30 = vadd.xlane.f32.xlu0 %v28
    %v31 = vpop.xlane.xlu0 %30
    %32 = vadd.xlane.f32.xlu0 %v29
    %v33 = vpop.xlane.xlu0 %32
    %v34 = vmul.f32 %v31, 0.0078125
    %v35 = vmul.f32 %v33, 0.0078125
    %v36 = vadd.f32 %v34, 1e-06
    %v37 = vadd.f32 %v35, 1e-06
    %v38 = vrsqrt.pop %v36
    %v39 = vrsqrt.pop %v37
    %v40 = vld [vmem:[%s1] sm:$0x1]
    %v41 = vmul.f32 %v26, %v38
    %v42 = vmul.f32 %v27, %v39
    %v44 = vlaneseq
    %v45 = vshrl.u32 %v44, 7
    %v46 = vsub.s32 0, %v45
    %v47 = vrot.slane %v40, %v46
    %v49 = vmul.f32 %v41, %v47
    %v50 = vmul.f32 %v42, %v47
    %51 = vst [vmem:[#allocation5] sm:$0xff] %v49
    %52 = vst [vmem:[#allocation5 + $0x8] sm:$0xff] %v50
    // Predicated region
    $region14: #{tpu_custom_call.1} parent=1 // pred_check
      _
    $region15: #{tpu_custom_call.1} parent=1 // pred_check_branch
      %54 = sbr.rel (0) target = $region17
    $region16: #{tpu_custom_call.1} parent=1 // pred_region
      %s56 = ssub.s32 256, 256
      %57 = vsyncadd [#allocation4], %s56
      %s58 = sshll.u32 [#allocation5], 4
      %s59 = int_to_ptr.vmem [resolvable:$true] %s58
      %64 = dma.vmem_to_hbm [thread:$0]  %s59, 256, %s2, [#allocation4], 128, 128, 8
    $region17: #{tpu_custom_call.1} parent=1 // pred_fallthru
      _
    // Predicated region
    $region18: #{tpu_custom_call.1} parent=1 // pred_check
      _
    $region19: #{tpu_custom_call.1} parent=1 // pred_check_branch
      %66 = sbr.rel (0) target = $region21
    $region20: #{tpu_custom_call.1} parent=1 // pred_region
      %67 = dma.done [#allocation4], 256
    $region21: #{tpu_custom_call.1} parent=1 // pred_fallthru
      _
    %68 = vsyncpa [#allocation3], 1
    %69 = vsyncpa [#allocation4], 1

</llo_original>
